<compile_context>
chip_gen: v7x
topology: tpu7x:2x2x1
jax: 0.10.0
libtpu: 0.0.40
codegen_flags: <defaults>
</compile_context>

<pallas_src>
import functools

import jax
import jax.numpy as jnp
import numpy as np
from jax.experimental import pallas as pl
from jax.experimental.pallas import tpu as pltpu

# ----------------------- problem configuration -----------------------
B = 2          # batch
L = 8          # max_seq_length
D_IN = 16      # inputs_dim
H = 32         # hidden_size
K = 3          # kernel_size
DIL = 2        # dilation
LN_EPS = 1e-5


# ----------------------- Pallas kernel -----------------------
def idcnn_kernel(x_ref, wl_ref, wconv_ref, pvec_ref, out_ref, act_ref, *,
                 batch, seq, kernel_size, dilation, mm_dtype):
  rows = batch * seq
  hdim = wl_ref.shape[1]
  half = (kernel_size - 1) // 2
  pad = half * dilation            # max halo width (covers dil=1 and dil=dilation)

  # Packed small params: rows = (bl, b0, b1, b2, gamma, beta), each [1, H].
  p = pvec_ref[...]
  bl, b0, b1, b2 = p[0:1, :], p[1:2, :], p[2:3, :], p[3:4, :]
  gamma, beta = p[4:5, :], p[5:6, :]

  # Persistent halo-padded activation slab.  Zero it once: the halo rows stay
  # zero for the whole kernel (they implement Conv1d's zero padding); every
  # layer writes only the interior rows.
  act_ref[...] = jnp.zeros_like(act_ref)

  def store_interior(h):
    # Exactly one cast per layer on the compact (rows, H) tensor (bf16 path);
    # a no-op in the default f32 path.
    act_ref[:, pad:pad + seq, :] = (
        h.reshape(batch, seq, hdim).astype(act_ref.dtype))

  # Zero 4th tap: pads the im2col contraction to (K+1)*H = 128 lanes so the
  # LHS is one full vreg lane width, matching the zero-padded (128, H) weights.
  ztap = jnp.zeros((batch, seq, hdim), mm_dtype)

  def conv_layer(layer, bias, dil):
    # im2col: K real taps (static slices of the halo-padded scratch) + 1 zero
    # tap, concatenated along lanes -> [rows, 128]; conv = one MXU matmul.
    taps = [
        act_ref[:, pad + (t - half) * dil: pad + (t - half) * dil + seq, :]
        for t in range(kernel_size)
    ]
    col = jnp.concatenate(taps + [ztap], axis=-1)
    col = col.reshape(rows, (kernel_size + 1) * hdim)
    return jnp.dot(col, wconv_ref[layer],
                   preferred_element_type=jnp.float32) + bias

  # Linear: [B*L, D_IN] @ [D_IN, H]   (x is pre-cast to mm_dtype host-side)
  h = jnp.dot(x_ref[...], wl_ref[...],
              preferred_element_type=jnp.float32) + bl
  store_interior(h)
  h = conv_layer(0, b0, 1)          # conv0, dilation 1
  store_interior(h)
  h = conv_layer(1, b1, 1)          # conv1, dilation 1
  store_interior(h)
  h = conv_layer(2, b2, dilation)   # dilated conv2
  # ReLU
  h = jnp.maximum(h, 0.0)
  # LayerNorm over hidden dim
  mean = jnp.mean(h, axis=-1, keepdims=True)
  var = jnp.mean((h - mean) ** 2, axis=-1, keepdims=True)
  h = (h - mean) * jax.lax.rsqrt(var + LN_EPS)
  h = h * gamma + beta

  # Lane-dense repack for the store: (rows, H) -> (rows*H/128, 128) by
  # concatenating groups of consecutive rows along lanes (row-major order is
  # preserved; the wrapper reshapes back to [B, L, H]).  Full-width store.
  if out_ref.shape != h.shape:
    out_rows = out_ref.shape[0]
    groups = rows // out_rows
    hr = h.reshape(out_rows, groups, hdim)
    h = jnp.concatenate([hr[:, g, :] for g in range(groups)], axis=-1)
  out_ref[...] = h.astype(out_ref.dtype)


def idcnn_block(x, params, dilation=DIL, matmul_dtype=jnp.float32):
  """x: [B, L, D_IN] -> [B, L, H]."""
  b_, l_, d_in = x.shape
  k, _, hdim = params["W0"].shape
  rows = b_ * l_
  half = (k - 1) // 2
  pad = half * dilation            # halo rows on each side of the scratch

  # Host-side packing / reshaping (no runtime cost inside the kernel).
  x2 = x.reshape(rows, d_in).astype(matmul_dtype)
  wl = params["Wl"].astype(matmul_dtype)

  def pack_conv_w(w):
    # [K, H_in, H_out] -> [(K+1)*H_in, H_out]: im2col layout plus one zero
    # row-block matching the zero 4th tap (pads the contraction to 128).
    w2 = w.reshape(k * hdim, hdim)
    return jnp.concatenate([w2, jnp.zeros((hdim, hdim), w.dtype)], axis=0)

  wconv = jnp.stack([pack_conv_w(params["W0"]),
                     pack_conv_w(params["W1"]),
                     pack_conv_w(params["W2"])], axis=0).astype(matmul_dtype)
  pvec = jnp.concatenate(
      [params["bl"], params["b0"], params["b1"], params["b2"],
       params["gamma"], params["beta"]], axis=0)            # [6, H], f32

  # Lane-dense output slab when the element count allows it.
  if (rows * hdim) % 128 == 0 and rows * hdim >= 128:
    out_rows, out_cols = (rows * hdim) // 128, 128
  else:
    out_rows, out_cols = rows, hdim

  full = lambda s: pl.BlockSpec(s, lambda i: (0,) * len(s))
  kernel = functools.partial(
      idcnn_kernel, batch=b_, seq=l_, kernel_size=k, dilation=dilation,
      mm_dtype=matmul_dtype)

  # TODO(synk): when stacking several IDCNNBlocks (the IDCNN model repeats
  # this block), fuse the whole stack / a larger rows slab into ONE pallas_call
  # so the weights stay VMEM-resident and the fixed per-call cost is amortized;
  # at rows=16 a single launch per block is latency-bound by construction.
  out2 = pl.pallas_call(
      kernel,
      out_shape=jax.ShapeDtypeStruct((out_rows, out_cols), jnp.float32),
      grid_spec=pltpu.PrefetchScalarGridSpec(
          num_scalar_prefetch=0,
          grid=(1,),                      # single step: everything resident
          in_specs=[full((rows, d_in)),                 # x (flattened B*L rows)
                    full((d_in, hdim)),                 # linear weight
                    full((3, (k + 1) * hdim, hdim)),    # packed+padded conv weights
                    full((6, hdim))],                   # packed biases/LN params
          out_specs=full((out_rows, out_cols)),
          scratch_shapes=[pltpu.VMEM((b_, l_ + 2 * pad, hdim), matmul_dtype)],
      ),
      # Tiny kernel: keep it on a single TensorCore (no megacore split).
      # (If rows grows, tile rows with a "parallel" grid axis for v7x's 2 TCs
      #  and re-check the 64 MiB VMEM ceiling.)
      compiler_params=pltpu.CompilerParams(
          dimension_semantics=("arbitrary",)),
  )(x2, wl, wconv, pvec)
  return out2.reshape(b_, l_, hdim)


# ----------------------- pure-JAX reference -----------------------
def ref_forward(x, params, dilation=DIL):
  h = x @ params["Wl"] + params["bl"]                        # [B, L, H]
  hc = jnp.transpose(h, (0, 2, 1))                           # [B, H, L] (NCL)

  def conv(xc, w_kio, b, dil):
    # w_kio: [K, H_in, H_out] -> OIH layout for lax conv
    w_oih = jnp.transpose(w_kio, (2, 1, 0))
    pad = (w_oih.shape[2] - 1) // 2 * dil
    y = jax.lax.conv_general_dilated(
        xc, w_oih, window_strides=(1,), padding=[(pad, pad)],
        rhs_dilation=(dil,), dimension_numbers=("NCH", "OIH", "NCH"))
    return y + b.reshape(1, -1, 1)

  hc = conv(hc, params["W0"], params["b0"], 1)
  hc = conv(hc, params["W1"], params["b1"], 1)
  hc = conv(hc, params["W2"], params["b2"], dilation)
  h = jnp.transpose(hc, (0, 2, 1))
  h = jnp.maximum(h, 0.0)
  mean = jnp.mean(h, axis=-1, keepdims=True)
  var = jnp.mean((h - mean) ** 2, axis=-1, keepdims=True)
  h = (h - mean) / jnp.sqrt(var + LN_EPS)
  return h * params["gamma"] + params["beta"]


# ----------------------- deterministic parameter init -----------------------
def init_params(key):
  ks = jax.random.split(key, 8)
  scale = 0.1
  params = {
      # linear: stored pre-transposed as [D_IN, H] (PyTorch weight is [H, D_IN])
      "Wl": scale * jax.random.normal(ks[0], (D_IN, H), jnp.float32),
      "bl": scale * jax.random.normal(ks[1], (1, H), jnp.float32),
      # convs: stored as [K, H_in, H_out] (PyTorch weight is [H_out, H_in, K])
      "W0": scale * jax.random.normal(ks[2], (K, H, H), jnp.float32),
      "b0": scale * jax.random.normal(ks[3], (1, H), jnp.float32),
      "W1": scale * jax.random.normal(ks[4], (K, H, H), jnp.float32),
      "b1": scale * jax.random.normal(ks[5], (1, H), jnp.float32),
      "W2": scale * jax.random.normal(ks[6], (K, H, H), jnp.float32),
      "b2": scale * jax.random.normal(ks[7], (1, H), jnp.float32),
      # layer_norm: gamma=1, beta=0 (PyTorch default init)
      "gamma": jnp.ones((1, H), jnp.float32),
      "beta": jnp.zeros((1, H), jnp.float32),
  }
  return params


if __name__ == "__main__":
  key = jax.random.PRNGKey(0)
  k_x, k_p = jax.random.split(key)
  x = jax.random.normal(k_x, (B, L, D_IN), jnp.float32)
  params = init_params(k_p)

  # f32 matmul path: bit-for-bit comparable to the f32 reference (and the
  # recommended configuration on v5e).
  out = jax.block_until_ready(idcnn_block(x, params))
  ref = ref_forward(x, params)
  np.testing.assert_allclose(np.asarray(out), np.asarray(ref),
                             rtol=1e-4, atol=1e-4)

  # bf16-MXU-input variant (v6e/v7x tuning option only): verify it lowers and
  # executes; the f32 path above remains the semantic ground truth.
  _ = jax.block_until_ready(idcnn_block(x, params, matmul_dtype=jnp.bfloat16))

  print("KERNEL_OK")
</pallas_src>

<mosaic_0001>
module attributes {stable_mosaic.version = 11 : i64} {
  func.func @idcnn_kernel(%arg0: i32, %arg1: memref<16x16xf32, #tpu.memory_space<vmem>>, %arg2: memref<16x32xf32, #tpu.memory_space<vmem>>, %arg3: memref<3x128x32xf32, #tpu.memory_space<vmem>>, %arg4: memref<6x32xf32, #tpu.memory_space<vmem>>, %arg5: memref<4x128xf32, #tpu.memory_space<vmem>>, %arg6: memref<2x12x32xf32, #tpu.memory_space<vmem>>) attributes {dimension_semantics = [#tpu.dimension_semantics<arbitrary>], iteration_bounds = array<i64: 1>, scalar_prefetch = 0 : i64, scratch_operands = 1 : i64, tpu.core_type = #tpu.core_type<tc>, window_params = [{pipeline_mode = #tpu.pipeline_mode<synchronous>, transform_indices = @transform_0, window_bounds = array<i64: 16, 16>}, {pipeline_mode = #tpu.pipeline_mode<synchronous>, transform_indices = @transform_1, window_bounds = array<i64: 16, 32>}, {pipeline_mode = #tpu.pipeline_mode<synchronous>, transform_indices = @transform_2, window_bounds = array<i64: 3, 128, 32>}, {pipeline_mode = #tpu.pipeline_mode<synchronous>, transform_indices = @transform_3, window_bounds = array<i64: 6, 32>}, {pipeline_mode = #tpu.pipeline_mode<synchronous>, transform_indices = @transform_4, window_bounds = array<i64: 4, 128>}]} {
    %c0 = arith.constant 0 : index
    %c0_0 = arith.constant 0 : index
    %0 = vector.load %arg4[%c0, %c0_0] : memref<6x32xf32, #tpu.memory_space<vmem>>, vector<6x32xf32>
    %1 = vector.extract_strided_slice %0 {offsets = [0, 0], sizes = [1, 32], strides = [1, 1]} : vector<6x32xf32> to vector<1x32xf32>
    %2 = vector.extract_strided_slice %0 {offsets = [1, 0], sizes = [1, 32], strides = [1, 1]} : vector<6x32xf32> to vector<1x32xf32>
    %3 = vector.extract_strided_slice %0 {offsets = [2, 0], sizes = [1, 32], strides = [1, 1]} : vector<6x32xf32> to vector<1x32xf32>
    %4 = vector.extract_strided_slice %0 {offsets = [3, 0], sizes = [1, 32], strides = [1, 1]} : vector<6x32xf32> to vector<1x32xf32>
    %5 = vector.extract_strided_slice %0 {offsets = [4, 0], sizes = [1, 32], strides = [1, 1]} : vector<6x32xf32> to vector<1x32xf32>
    %6 = vector.extract_strided_slice %0 {offsets = [5, 0], sizes = [1, 32], strides = [1, 1]} : vector<6x32xf32> to vector<1x32xf32>
    %cst = arith.constant 0.000000e+00 : f32
    %7 = vector.broadcast %cst : f32 to vector<2x12x32xf32>
    %c0_1 = arith.constant 0 : index
    %c0_2 = arith.constant 0 : index
    %c0_3 = arith.constant 0 : index
    %8 = vector.load %arg6[%c0_1, %c0_2, %c0_3] : memref<2x12x32xf32, #tpu.memory_space<vmem>>, vector<2x12x32xf32>
    tpu.vector_store %arg6[%c0_1, %c0_2, %c0_3], %7 {strides = array<i32>} : memref<2x12x32xf32, #tpu.memory_space<vmem>>, vector<2x12x32xf32>,
    %cst_4 = arith.constant 0.000000e+00 : f32
    %9 = vector.broadcast %cst_4 : f32 to vector<2x8x32xf32>
    %c0_5 = arith.constant 0 : index
    %c0_6 = arith.constant 0 : index
    %10 = vector.load %arg1[%c0_5, %c0_6] : memref<16x16xf32, #tpu.memory_space<vmem>>, vector<16x16xf32>
    %c0_7 = arith.constant 0 : index
    %c0_8 = arith.constant 0 : index
    %11 = vector.load %arg2[%c0_7, %c0_8] : memref<16x32xf32, #tpu.memory_space<vmem>>, vector<16x32xf32>
    %cst_9 = arith.constant dense<0.000000e+00> : vector<16x32xf32>
    %12 = tpu.matmul %10, %11, %cst_9 {dimension_numbers = #tpu.dot_dimension_numbers<[1], [0], [0], [1], [0, 0, 1, 1], [], []>} : vector<16x16xf32>, vector<16x32xf32>, vector<16x32xf32> -> vector<16x32xf32>
    %13 = vector.broadcast %1 : vector<1x32xf32> to vector<16x32xf32>
    %14 = arith.addf %12, %13 : vector<16x32xf32>
    %15 = vector.shape_cast %14 : vector<16x32xf32> to vector<2x8x32xf32>
    %c0_10 = arith.constant 0 : index
    %c2 = arith.constant 2 : index
    %c0_11 = arith.constant 0 : index
    %16 = vector.load %arg6[%c0_10, %c2, %c0_11] : memref<2x12x32xf32, #tpu.memory_space<vmem>>, vector<2x8x32xf32>
    tpu.vector_store %arg6[%c0_10, %c2, %c0_11], %15 {strides = array<i32>} : memref<2x12x32xf32, #tpu.memory_space<vmem>>, vector<2x8x32xf32>,
    %c0_12 = arith.constant 0 : index
    %c1 = arith.constant 1 : index
    %c0_13 = arith.constant 0 : index
    %17 = vector.load %arg6[%c0_12, %c1, %c0_13] : memref<2x12x32xf32, #tpu.memory_space<vmem>>, vector<2x8x32xf32>
    %c0_14 = arith.constant 0 : index
    %c2_15 = arith.constant 2 : index
    %c0_16 = arith.constant 0 : index
    %18 = vector.load %arg6[%c0_14, %c2_15, %c0_16] : memref<2x12x32xf32, #tpu.memory_space<vmem>>, vector<2x8x32xf32>
    %c0_17 = arith.constant 0 : index
    %c3 = arith.constant 3 : index
    %c0_18 = arith.constant 0 : index
    %19 = vector.load %arg6[%c0_17, %c3, %c0_18] : memref<2x12x32xf32, #tpu.memory_space<vmem>>, vector<2x8x32xf32>
    %20 = tpu.concatenate %17, %18, %19, %9 in 2 : vector<2x8x32xf32>, vector<2x8x32xf32>, vector<2x8x32xf32>, vector<2x8x32xf32> -> vector<2x8x128xf32>
    %21 = vector.shape_cast %20 : vector<2x8x128xf32> to vector<16x128xf32>
    %c0_19 = arith.constant 0 : index
    %c0_20 = arith.constant 0 : index
    %c0_21 = arith.constant 0 : index
    %22 = vector.load %arg3[%c0_19, %c0_20, %c0_21] : memref<3x128x32xf32, #tpu.memory_space<vmem>>, vector<1x128x32xf32>
    %23 = vector.shape_cast %22 : vector<1x128x32xf32> to vector<128x32xf32>
    %cst_22 = arith.constant dense<0.000000e+00> : vector<16x32xf32>
    %24 = tpu.matmul %21, %23, %cst_22 {dimension_numbers = #tpu.dot_dimension_numbers<[1], [0], [0], [1], [0, 0, 1, 1], [], []>} : vector<16x128xf32>, vector<128x32xf32>, vector<16x32xf32> -> vector<16x32xf32>
    %25 = vector.broadcast %2 : vector<1x32xf32> to vector<16x32xf32>
    %26 = arith.addf %24, %25 : vector<16x32xf32>
    %27 = vector.shape_cast %26 : vector<16x32xf32> to vector<2x8x32xf32>
    %c0_23 = arith.constant 0 : index
    %c2_24 = arith.constant 2 : index
    %c0_25 = arith.constant 0 : index
    %28 = vector.load %arg6[%c0_23, %c2_24, %c0_25] : memref<2x12x32xf32, #tpu.memory_space<vmem>>, vector<2x8x32xf32>
    tpu.vector_store %arg6[%c0_23, %c2_24, %c0_25], %27 {strides = array<i32>} : memref<2x12x32xf32, #tpu.memory_space<vmem>>, vector<2x8x32xf32>,
    %c0_26 = arith.constant 0 : index
    %c1_27 = arith.constant 1 : index
    %c0_28 = arith.constant 0 : index
    %29 = vector.load %arg6[%c0_26, %c1_27, %c0_28] : memref<2x12x32xf32, #tpu.memory_space<vmem>>, vector<2x8x32xf32>
    %c0_29 = arith.constant 0 : index
    %c2_30 = arith.constant 2 : index
    %c0_31 = arith.constant 0 : index
    %30 = vector.load %arg6[%c0_29, %c2_30, %c0_31] : memref<2x12x32xf32, #tpu.memory_space<vmem>>, vector<2x8x32xf32>
    %c0_32 = arith.constant 0 : index
    %c3_33 = arith.constant 3 : index
    %c0_34 = arith.constant 0 : index
    %31 = vector.load %arg6[%c0_32, %c3_33, %c0_34] : memref<2x12x32xf32, #tpu.memory_space<vmem>>, vector<2x8x32xf32>
    %32 = tpu.concatenate %29, %30, %31, %9 in 2 : vector<2x8x32xf32>, vector<2x8x32xf32>, vector<2x8x32xf32>, vector<2x8x32xf32> -> vector<2x8x128xf32>
    %33 = vector.shape_cast %32 : vector<2x8x128xf32> to vector<16x128xf32>
    %c1_35 = arith.constant 1 : index
    %c0_36 = arith.constant 0 : index
    %c0_37 = arith.constant 0 : index
    %34 = vector.load %arg3[%c1_35, %c0_36, %c0_37] : memref<3x128x32xf32, #tpu.memory_space<vmem>>, vector<1x128x32xf32>
    %35 = vector.shape_cast %34 : vector<1x128x32xf32> to vector<128x32xf32>
    %cst_38 = arith.constant dense<0.000000e+00> : vector<16x32xf32>
    %36 = tpu.matmul %33, %35, %cst_38 {dimension_numbers = #tpu.dot_dimension_numbers<[1], [0], [0], [1], [0, 0, 1, 1], [], []>} : vector<16x128xf32>, vector<128x32xf32>, vector<16x32xf32> -> vector<16x32xf32>
    %37 = vector.broadcast %3 : vector<1x32xf32> to vector<16x32xf32>
    %38 = arith.addf %36, %37 : vector<16x32xf32>
    %39 = vector.shape_cast %38 : vector<16x32xf32> to vector<2x8x32xf32>
    %c0_39 = arith.constant 0 : index
    %c2_40 = arith.constant 2 : index
    %c0_41 = arith.constant 0 : index
    %40 = vector.load %arg6[%c0_39, %c2_40, %c0_41] : memref<2x12x32xf32, #tpu.memory_space<vmem>>, vector<2x8x32xf32>
    tpu.vector_store %arg6[%c0_39, %c2_40, %c0_41], %39 {strides = array<i32>} : memref<2x12x32xf32, #tpu.memory_space<vmem>>, vector<2x8x32xf32>,
    %c0_42 = arith.constant 0 : index
    %c0_43 = arith.constant 0 : index
    %c0_44 = arith.constant 0 : index
    %41 = vector.load %arg6[%c0_42, %c0_43, %c0_44] : memref<2x12x32xf32, #tpu.memory_space<vmem>>, vector<2x8x32xf32>
    %c0_45 = arith.constant 0 : index
    %c2_46 = arith.constant 2 : index
    %c0_47 = arith.constant 0 : index
    %42 = vector.load %arg6[%c0_45, %c2_46, %c0_47] : memref<2x12x32xf32, #tpu.memory_space<vmem>>, vector<2x8x32xf32>
    %c0_48 = arith.constant 0 : index
    %c4 = arith.constant 4 : index
    %c0_49 = arith.constant 0 : index
    %43 = vector.load %arg6[%c0_48, %c4, %c0_49] : memref<2x12x32xf32, #tpu.memory_space<vmem>>, vector<2x8x32xf32>
    %44 = tpu.concatenate %41, %42, %43, %9 in 2 : vector<2x8x32xf32>, vector<2x8x32xf32>, vector<2x8x32xf32>, vector<2x8x32xf32> -> vector<2x8x128xf32>
    %45 = vector.shape_cast %44 : vector<2x8x128xf32> to vector<16x128xf32>
    %c2_50 = arith.constant 2 : index
    %c0_51 = arith.constant 0 : index
    %c0_52 = arith.constant 0 : index
    %46 = vector.load %arg3[%c2_50, %c0_51, %c0_52] : memref<3x128x32xf32, #tpu.memory_space<vmem>>, vector<1x128x32xf32>
    %47 = vector.shape_cast %46 : vector<1x128x32xf32> to vector<128x32xf32>
    %cst_53 = arith.constant dense<0.000000e+00> : vector<16x32xf32>
    %48 = tpu.matmul %45, %47, %cst_53 {dimension_numbers = #tpu.dot_dimension_numbers<[1], [0], [0], [1], [0, 0, 1, 1], [], []>} : vector<16x128xf32>, vector<128x32xf32>, vector<16x32xf32> -> vector<16x32xf32>
    %49 = vector.broadcast %4 : vector<1x32xf32> to vector<16x32xf32>
    %50 = arith.addf %48, %49 : vector<16x32xf32>
    %cst_54 = arith.constant 0.000000e+00 : f32
    %51 = vector.broadcast %cst_54 : f32 to vector<16x32xf32>
    %52 = arith.maximumf %50, %51 : vector<16x32xf32>
    %cst_55 = arith.constant dense<0.000000e+00> : vector<16xf32>
    %53 = vector.multi_reduction <add>, %52, %cst_55 [1] : vector<16x32xf32> to vector<16xf32>
    %54 = vector.shape_cast %53 : vector<16xf32> to vector<16x1xf32>
    %cst_56 = arith.constant 3.200000e+01 : f32
    %55 = vector.broadcast %cst_56 : f32 to vector<16x1xf32>
    %56 = arith.divf %54, %55 : vector<16x1xf32>
    %57 = vector.broadcast %56 : vector<16x1xf32> to vector<16x32xf32>
    %58 = arith.subf %52, %57 : vector<16x32xf32>
    %59 = arith.mulf %58, %58 : vector<16x32xf32>
    %cst_57 = arith.constant dense<0.000000e+00> : vector<16xf32>
    %60 = vector.multi_reduction <add>, %59, %cst_57 [1] : vector<16x32xf32> to vector<16xf32>
    %61 = vector.shape_cast %60 : vector<16xf32> to vector<16x1xf32>
    %cst_58 = arith.constant 3.200000e+01 : f32
    %62 = vector.broadcast %cst_58 : f32 to vector<16x1xf32>
    %63 = arith.divf %61, %62 : vector<16x1xf32>
    %64 = vector.broadcast %56 : vector<16x1xf32> to vector<16x32xf32>
    %65 = arith.subf %52, %64 : vector<16x32xf32>
    %cst_59 = arith.constant 9.99999974E-6 : f32
    %66 = vector.broadcast %cst_59 : f32 to vector<16x1xf32>
    %67 = arith.addf %63, %66 : vector<16x1xf32>
    %68 = math.rsqrt %67 : vector<16x1xf32>
    %69 = vector.broadcast %68 : vector<16x1xf32> to vector<16x32xf32>
    %70 = arith.mulf %65, %69 : vector<16x32xf32>
    %71 = vector.broadcast %5 : vector<1x32xf32> to vector<16x32xf32>
    %72 = arith.mulf %70, %71 : vector<16x32xf32>
    %73 = vector.broadcast %6 : vector<1x32xf32> to vector<16x32xf32>
    %74 = arith.addf %72, %73 : vector<16x32xf32>
    %75 = vector.shape_cast %74 : vector<16x32xf32> to vector<4x4x32xf32>
    %76 = vector.extract_strided_slice %75 {offsets = [0, 0, 0], sizes = [4, 1, 32], strides = [1, 1, 1]} : vector<4x4x32xf32> to vector<4x1x32xf32>
    %77 = vector.shape_cast %76 : vector<4x1x32xf32> to vector<4x32xf32>
    %78 = vector.extract_strided_slice %75 {offsets = [0, 1, 0], sizes = [4, 1, 32], strides = [1, 1, 1]} : vector<4x4x32xf32> to vector<4x1x32xf32>
    %79 = vector.shape_cast %78 : vector<4x1x32xf32> to vector<4x32xf32>
    %80 = vector.extract_strided_slice %75 {offsets = [0, 2, 0], sizes = [4, 1, 32], strides = [1, 1, 1]} : vector<4x4x32xf32> to vector<4x1x32xf32>
    %81 = vector.shape_cast %80 : vector<4x1x32xf32> to vector<4x32xf32>
    %82 = vector.extract_strided_slice %75 {offsets = [0, 3, 0], sizes = [4, 1, 32], strides = [1, 1, 1]} : vector<4x4x32xf32> to vector<4x1x32xf32>
    %83 = vector.shape_cast %82 : vector<4x1x32xf32> to vector<4x32xf32>
    %84 = tpu.concatenate %77, %79, %81, %83 in 1 : vector<4x32xf32>, vector<4x32xf32>, vector<4x32xf32>, vector<4x32xf32> -> vector<4x128xf32>
    %c0_60 = arith.constant 0 : index
    %c0_61 = arith.constant 0 : index
    %85 = vector.load %arg5[%c0_60, %c0_61] : memref<4x128xf32, #tpu.memory_space<vmem>>, vector<4x128xf32>
    tpu.vector_store %arg5[%c0_60, %c0_61], %84 {strides = array<i32>} : memref<4x128xf32, #tpu.memory_space<vmem>>, vector<4x128xf32>,
    return
  }
  func.func @transform_0(%arg0: i32) -> (i32, i32) {
    %c0_i32 = arith.constant 0 : i32
    %c0_i32_0 = arith.constant 0 : i32
    %c0_i32_1 = arith.constant 0 : i32
    return %c0_i32, %c0_i32_0 : i32, i32
  }
  func.func @transform_1(%arg0: i32) -> (i32, i32) {
    %c0_i32 = arith.constant 0 : i32
    %c0_i32_0 = arith.constant 0 : i32
    %c0_i32_1 = arith.constant 0 : i32
    return %c0_i32, %c0_i32_0 : i32, i32
  }
  func.func @transform_2(%arg0: i32) -> (i32, i32, i32) {
    %c0_i32 = arith.constant 0 : i32
    %c0_i32_0 = arith.constant 0 : i32
    %c0_i32_1 = arith.constant 0 : i32
    %c0_i32_2 = arith.constant 0 : i32
    return %c0_i32, %c0_i32_0, %c0_i32_1 : i32, i32, i32
  }
  func.func @transform_3(%arg0: i32) -> (i32, i32) {
    %c0_i32 = arith.constant 0 : i32
    %c0_i32_0 = arith.constant 0 : i32
    %c0_i32_1 = arith.constant 0 : i32
    return %c0_i32, %c0_i32_0 : i32, i32
  }
  func.func @transform_4(%arg0: i32) -> (i32, i32) {
    %c0_i32 = arith.constant 0 : i32
    %c0_i32_0 = arith.constant 0 : i32
    %c0_i32_1 = arith.constant 0 : i32
    return %c0_i32, %c0_i32_0 : i32, i32
  }
}

</mosaic_0001>

<llo_original>
// kernel: tpu_custom_call.1
$region0: #{tpu_custom_call.1}
  #allocation0 [shape = 'u32[]', space=smem, size = 0x4, offset = 0x4, fixed_abs, tag = 'smem constant byte address 0x4 - core index']
  #allocation1 [shape = 'u32[144,128]{1,0:T(1,128)}', space=vmem, size = 0x12000, scoped, tag = 'internal scratch']
  #allocation2 [shape = 'f32[2,12,32]{2,1,0:T(8,128)}', space=vmem, size = 0x4000, scoped, tag = 'scratch operand']
  %s0 = inlined_call_operand.vmem [shape: f32[16,16], index: 0, kind: input, shape index: {}]
  %s1 = inlined_call_operand.vmem [shape: f32[16,32], index: 1, kind: input, shape index: {}]
  %s2 = inlined_call_operand.vmem [shape: f32[3,128,32], index: 2, kind: input, shape index: {}]
  %s3 = inlined_call_operand.vmem [shape: f32[6,32], index: 3, kind: input, shape index: {}]
  %s4 = inlined_call_operand.hbm [shape: f32[4,128], index: 4, kind: output, shape index: {}]
  %s5 = sld [smem:[#allocation0]]
  $region26: #{tpu_custom_call.1} parent=0
    _
  %s7 = ssub.s32 1, %s5
  %s8 = scalar_select 0, %s7, %s5
  $region1: #{tpu_custom_call.1} parent=0
    #allocation3 [shape = 'u8[2048]{0}', space=vmem, size = 0x800, scoped, tag = 'output window, operand 0, single buffered']
    #allocation4 [shape = 's32[1]{0}', space=sflag, size = 0x4, scoped, tag = 'scoped memory for tpu_custom_call.1']
    %9 = vsyncpa [#allocation4], 0
    // Predicated region
    $region2: #{tpu_custom_call.1} parent=1 // pred_check
      _
    $region3: #{tpu_custom_call.1} parent=1 // pred_check_branch
      %11 = sbr.rel (0) target = $region5
    $region4: #{tpu_custom_call.1} parent=1 // pred_region
      _
    $region5: #{tpu_custom_call.1} parent=1 // pred_fallthru
      _
    // Predicated region
    $region6: #{tpu_custom_call.1} parent=1 // pred_check
      _
    $region7: #{tpu_custom_call.1} parent=1 // pred_check_branch
      %13 = sbr.rel (0) target = $region9
    $region8: #{tpu_custom_call.1} parent=1 // pred_region
      _
    $region9: #{tpu_custom_call.1} parent=1 // pred_fallthru
      _
    // Predicated region
    $region10: #{tpu_custom_call.1} parent=1 // pred_check
      _
    $region11: #{tpu_custom_call.1} parent=1 // pred_check_branch
      %15 = sbr.rel (0) target = $region13
    $region12: #{tpu_custom_call.1} parent=1 // pred_region
      _
    $region13: #{tpu_custom_call.1} parent=1 // pred_fallthru
      _
    // Predicated region
    $region14: #{tpu_custom_call.1} parent=1 // pred_check
      _
    $region15: #{tpu_custom_call.1} parent=1 // pred_check_branch
      %17 = sbr.rel (0) target = $region17
    $region16: #{tpu_custom_call.1} parent=1 // pred_region
      _
    $region17: #{tpu_custom_call.1} parent=1 // pred_fallthru
      _
    %v18 = vld [vmem:[%s3] sm:$0x3f]
    %vm19 = vcmask 261120
    %20 = vst.msk [vmem:[#allocation2] sm:$0xff] %vm19, 0.0
    %vm21 = vcmask 257024
    %22 = vst.msk [vmem:[#allocation2 + $0x8] sm:$0xf] %vm21, 0.0
    %23 = vst.msk [vmem:[#allocation2 + $0x10] sm:$0xff] %vm19, 0.0
    %24 = vst.msk [vmem:[#allocation2 + $0x18] sm:$0xf] %vm21, 0.0
    %v25 = vld [vmem:[%s0] sm:$0xff]
    %v26 = vld [vmem:[%s0 + $0x8] sm:$0xff]
    %v27 = vld [vmem:[%s1] sm:$0xff]
    %v28 = vld [vmem:[%s1 + $0x8] sm:$0xff]
    %v29 = vlaneseq
    %v30 = vshrl.u32 %v29, 7
    %v31 = vsub.s32 0, %v30
    %v32 = vrot.slane %v18, %v31
    %vm33 = vcmask 130048
    %v35 = vsel %vm33, %v25, 0
    %v38 = vsel %vm33, %v26, 0
    %40 = vmatprep.subr.mxu0 0.0
    %41 = vmatpush1.msra.mxu0 %v27
    %42 = vmatprep.subr.mxu0 0.0
    %43 = vmatpush1.msra.mxu0 %v28
    %44 = vmatprep.subr.mxu0 0.0
    %45 = vmatpush1.msra.mxu0 0.0
    %46 = vmatprep.subr.mxu0 0.0
    %47 = vmatpush1.msra.mxu0 0.0
    %48 = vmatprep.subr.mxu0 0.0
    %49 = vmatpush1.msra.mxu0 0.0
    %50 = vmatprep.subr.mxu0 0.0
    %51 = vmatpush1.msra.mxu0 0.0
    %52 = vmatprep.subr.mxu0 0.0
    %53 = vmatpush1.msra.mxu0 0.0
    %54 = vmatprep.subr.mxu0 0.0
    %55 = vmatpush1.msra.mxu0 0.0
    %56 = vmatprep.subr.mxu0 0.0
    %57 = vmatpush1.msra.mxu0 0.0
    %58 = vmatprep.subr.mxu0 0.0
    %59 = vmatpush1.msra.mxu0 0.0
    %60 = vmatprep.subr.mxu0 0.0
    %61 = vmatpush1.msra.mxu0 0.0
    %62 = vmatprep.subr.mxu0 0.0
    %63 = vmatpush1.msra.mxu0 0.0
    %64 = vmatprep.subr.mxu0 0.0
    %65 = vmatpush1.msra.mxu0 0.0
    %66 = vmatprep.subr.mxu0 0.0
    %67 = vmatpush1.msra.mxu0 0.0
    %68 = vmatprep.subr.mxu0 0.0
    %69 = vmatpush1.msra.mxu0 0.0
    %70 = vmatprep.subr.mxu0 0.0
    %71 = vmatpush1.msra.mxu0 0.0
    %72 = vmatprep.subr.mxu0 0.0
    %73 = vmatpush1.msra.mxu0 0.0
    %74 = vmatprep.subr.mxu0 0.0
    %75 = vmatpush1.msra.mxu0 0.0
    %76 = vmatprep.subr.mxu0 0.0
    %77 = vmatpush1.msra.mxu0 0.0
    %78 = vmatprep.subr.mxu0 0.0
    %79 = vmatpush1.msra.mxu0 0.0
    %80 = vmatprep.subr.mxu0 0.0
    %81 = vmatpush1.msra.mxu0 0.0
    %82 = vmatprep.subr.mxu0 0.0
    %83 = vmatpush1.msra.mxu0 0.0
    %84 = vmatprep.subr.mxu0 0.0
    %85 = vmatpush1.msra.mxu0 0.0
    %86 = vmatprep.subr.mxu0 0.0
    %87 = vmatpush1.msra.mxu0 0.0
    %88 = vmatprep.subr.mxu0 0.0
    %89 = vmatpush1.msra.mxu0 0.0
    %90 = vmatprep.subr.mxu0 0.0
    %91 = vmatpush1.msra.mxu0 0.0
    %92 = vmatprep.subr.mxu0 0.0
    %93 = vmatpush1.msra.mxu0 0.0
    %94 = vmatprep.subr.mxu0 0.0
    %95 = vmatpush1.msra.mxu0 0.0
    %96 = vmatprep.subr.mxu0 0.0
    %97 = vmatpush1.msra.mxu0 0.0
    %98 = vmatprep.subr.mxu0 0.0
    %99 = vmatpush1.msra.mxu0 0.0
    %100 = vmatprep.subr.mxu0 0.0
    %101 = vmatpush1.msra.mxu0 0.0
    %102 = vmatprep.subr.mxu0 0.0
    %103 = vmatpush1.msra.mxu0 0.0
    %104 = vmatprep.mubr.f32.mxu0 0.0
    %105 = vmatmul.mubr.f32.gmra.mrb[0].mxu0 %v35
    %v106 = vpop.f32.mrb[0].mxu0
    %v107 = vadd.f32 %v32, %v106
    %v108 = vpop.f32.mrb[0].mxu0
    %109 = vmatprep.mubr.f32.mxu0 0.0
    %110 = vmatmul.mubr.f32.gmra.mrb[0].mxu0 %v38
    %v111 = vpop.f32.mrb[0].mxu0
    %v112 = vadd.f32 %v32, %v111
    %v113 = vpop.f32.mrb[0].mxu0
    %114 = vdwg.mxu0
    %115 = vst.msk [vmem:[#allocation2 + $0x2] sm:$0xff] %vm19, %v107
    %116 = vst.msk [vmem:[#allocation2 + $0x12] sm:$0xff] %vm19, %v112
    %v117 = vld [vmem:[#allocation2 + $0x1] sm:$0xff]
    %v118 = vld [vmem:[#allocation2 + $0x11] sm:$0xff]
    %v119 = vld [vmem:[#allocation2 + $0x2] sm:$0xff]
    %v120 = vld [vmem:[#allocation2 + $0x12] sm:$0xff]
    %v121 = vld [vmem:[#allocation2 + $0x3] sm:$0xff]
    %v122 = vld [vmem:[#allocation2 + $0x13] sm:$0xff]
    %125 = vrot.lane.b32.xlu0 %v119, 32
    %v126 = vpop.permute.xlu0 %125
    %127 = vrot.lane.b32.xlu0 %v120, 32
    %v128 = vpop.permute.xlu0 %127
    %133 = vrot.lane.b32.xlu0 %v121, 64
    %v134 = vpop.permute.xlu0 %133
    %135 = vrot.lane.b32.xlu0 %v122, 64
    %v136 = vpop.permute.xlu0 %135
    %v139 = vsel %vm19, %v117, %v126
    %v140 = vsel %vm19, %v118, %v128
    %vm141 = vcmask 523264
    %v142 = vsel %vm141, %v139, %v134
    %v143 = vsel %vm141, %v140, %v136
    %vm144 = vcmask 785408
    %v145 = vsel %vm144, %v142, 0.0
    %v146 = vsel %vm144, %v143, 0.0
    %v147 = vld [vmem:[%s2] sm:$0xff]
    %v148 = vld [vmem:[%s2 + $0x8] sm:$0xff]
    %v149 = vld [vmem:[%s2 + $0x10] sm:$0xff]
    %v150 = vld [vmem:[%s2 + $0x18] sm:$0xff]
    %v151 = vld [vmem:[%s2 + $0x20] sm:$0xff]
    %v152 = vld [vmem:[%s2 + $0x28] sm:$0xff]
    %v153 = vld [vmem:[%s2 + $0x30] sm:$0xff]
    %v154 = vld [vmem:[%s2 + $0x38] sm:$0xff]
    %v155 = vld [vmem:[%s2 + $0x40] sm:$0xff]
    %v156 = vld [vmem:[%s2 + $0x48] sm:$0xff]
    %v157 = vld [vmem:[%s2 + $0x50] sm:$0xff]
    %v158 = vld [vmem:[%s2 + $0x58] sm:$0xff]
    %v159 = vld [vmem:[%s2 + $0x60] sm:$0xff]
    %v160 = vld [vmem:[%s2 + $0x68] sm:$0xff]
    %v161 = vld [vmem:[%s2 + $0x70] sm:$0xff]
    %v162 = vld [vmem:[%s2 + $0x78] sm:$0xff]
    %v163 = vlaneseq
    %v164 = vshrl.u32 %v163, 7
    %v165 = vsub.s32 1, %v164
    %v166 = vrot.slane %v18, %v165
    %167 = vmatprep.subr.mxu0 0.0
    %168 = vmatpush1.msra.mxu0 %v147
    %169 = vmatprep.subr.mxu0 0.0
    %170 = vmatpush1.msra.mxu0 %v148
    %171 = vmatprep.subr.mxu0 0.0
    %172 = vmatpush1.msra.mxu0 %v149
    %173 = vmatprep.subr.mxu0 0.0
    %174 = vmatpush1.msra.mxu0 %v150
    %175 = vmatprep.subr.mxu0 0.0
    %176 = vmatpush1.msra.mxu0 %v151
    %177 = vmatprep.subr.mxu0 0.0
    %178 = vmatpush1.msra.mxu0 %v152
    %179 = vmatprep.subr.mxu0 0.0
    %180 = vmatpush1.msra.mxu0 %v153
    %181 = vmatprep.subr.mxu0 0.0
    %182 = vmatpush1.msra.mxu0 %v154
    %183 = vmatprep.subr.mxu0 0.0
    %184 = vmatpush1.msra.mxu0 %v155
    %185 = vmatprep.subr.mxu0 0.0
    %186 = vmatpush1.msra.mxu0 %v156
    %187 = vmatprep.subr.mxu0 0.0
    %188 = vmatpush1.msra.mxu0 %v157
    %189 = vmatprep.subr.mxu0 0.0
    %190 = vmatpush1.msra.mxu0 %v158
    %191 = vmatprep.subr.mxu0 0.0
    %192 = vmatpush1.msra.mxu0 %v159
    %193 = vmatprep.subr.mxu0 0.0
    %194 = vmatpush1.msra.mxu0 %v160
    %195 = vmatprep.subr.mxu0 0.0
    %196 = vmatpush1.msra.mxu0 %v161
    %197 = vmatprep.subr.mxu0 0.0
    %198 = vmatpush1.msra.mxu0 %v162
    %199 = vmatprep.subr.mxu0 0.0
    %200 = vmatpush1.msra.mxu0 0.0
    %201 = vmatprep.subr.mxu0 0.0
    %202 = vmatpush1.msra.mxu0 0.0
    %203 = vmatprep.subr.mxu0 0.0
    %204 = vmatpush1.msra.mxu0 0.0
    %205 = vmatprep.subr.mxu0 0.0
    %206 = vmatpush1.msra.mxu0 0.0
    %207 = vmatprep.subr.mxu0 0.0
    %208 = vmatpush1.msra.mxu0 0.0
    %209 = vmatprep.subr.mxu0 0.0
    %210 = vmatpush1.msra.mxu0 0.0
    %211 = vmatprep.subr.mxu0 0.0
    %212 = vmatpush1.msra.mxu0 0.0
    %213 = vmatprep.subr.mxu0 0.0
    %214 = vmatpush1.msra.mxu0 0.0
    %215 = vmatprep.subr.mxu0 0.0
    %216 = vmatpush1.msra.mxu0 0.0
    %217 = vmatprep.subr.mxu0 0.0
    %218 = vmatpush1.msra.mxu0 0.0
    %219 = vmatprep.subr.mxu0 0.0
    %220 = vmatpush1.msra.mxu0 0.0
    %221 = vmatprep.subr.mxu0 0.0
    %222 = vmatpush1.msra.mxu0 0.0
    %223 = vmatprep.subr.mxu0 0.0
    %224 = vmatpush1.msra.mxu0 0.0
    %225 = vmatprep.subr.mxu0 0.0
    %226 = vmatpush1.msra.mxu0 0.0
    %227 = vmatprep.subr.mxu0 0.0
    %228 = vmatpush1.msra.mxu0 0.0
    %229 = vmatprep.subr.mxu0 0.0
    %230 = vmatpush1.msra.mxu0 0.0
    %231 = vmatprep.mubr.f32.mxu0 0.0
    %232 = vmatmul.mubr.f32.gmra.mrb[0].mxu0 %v145
    %v233 = vpop.f32.mrb[0].mxu0
    %v234 = vadd.f32 %v166, %v233
    %v235 = vpop.f32.mrb[0].mxu0
    %236 = vmatprep.mubr.f32.mxu0 0.0
    %237 = vmatmul.mubr.f32.gmra.mrb[0].mxu0 %v146
    %v238 = vpop.f32.mrb[0].mxu0
    %v239 = vadd.f32 %v166, %v238
    %v240 = vpop.f32.mrb[0].mxu0
    %241 = vdwg.mxu0
    %242 = vst.msk [vmem:[#allocation2 + $0x2] sm:$0xff] %vm19, %v234
    %243 = vst.msk [vmem:[#allocation2 + $0x12] sm:$0xff] %vm19, %v239
    %v244 = vld [vmem:[#allocation2 + $0x1] sm:$0xff]
    %v245 = vld [vmem:[#allocation2 + $0x11] sm:$0xff]
    %v246 = vld [vmem:[#allocation2 + $0x2] sm:$0xff]
    %v247 = vld [vmem:[#allocation2 + $0x12] sm:$0xff]
    %v248 = vld [vmem:[#allocation2 + $0x3] sm:$0xff]
    %v249 = vld [vmem:[#allocation2 + $0x13] sm:$0xff]
    %252 = vrot.lane.b32.xlu0 %v246, 32
    %v253 = vpop.permute.xlu0 %252
    %254 = vrot.lane.b32.xlu0 %v247, 32
    %v255 = vpop.permute.xlu0 %254
    %260 = vrot.lane.b32.xlu0 %v248, 64
    %v261 = vpop.permute.xlu0 %260
    %262 = vrot.lane.b32.xlu0 %v249, 64
    %v263 = vpop.permute.xlu0 %262
    %v266 = vsel %vm19, %v244, %v253
    %v267 = vsel %vm19, %v245, %v255
    %v268 = vsel %vm141, %v266, %v261
    %v269 = vsel %vm141, %v267, %v263
    %v270 = vsel %vm144, %v268, 0.0
    %v271 = vsel %vm144, %v269, 0.0
    %s272 = scalar_lea.vmem %s2, 128
    %v273 = vld [vmem:[%s272] sm:$0xff]
    %v274 = vld [vmem:[%s272 + $0x8] sm:$0xff]
    %v275 = vld [vmem:[%s272 + $0x10] sm:$0xff]
    %v276 = vld [vmem:[%s272 + $0x18] sm:$0xff]
    %v277 = vld [vmem:[%s272 + $0x20] sm:$0xff]
    %v278 = vld [vmem:[%s272 + $0x28] sm:$0xff]
    %v279 = vld [vmem:[%s272 + $0x30] sm:$0xff]
    %v280 = vld [vmem:[%s272 + $0x38] sm:$0xff]
    %v281 = vld [vmem:[%s272 + $0x40] sm:$0xff]
    %v282 = vld [vmem:[%s272 + $0x48] sm:$0xff]
    %v283 = vld [vmem:[%s272 + $0x50] sm:$0xff]
    %v284 = vld [vmem:[%s272 + $0x58] sm:$0xff]
    %v285 = vld [vmem:[%s272 + $0x60] sm:$0xff]
    %v286 = vld [vmem:[%s272 + $0x68] sm:$0xff]
    %v287 = vld [vmem:[%s272 + $0x70] sm:$0xff]
    %v288 = vld [vmem:[%s272 + $0x78] sm:$0xff]
    %v289 = vlaneseq
    %v290 = vshrl.u32 %v289, 7
    %v291 = vsub.s32 2, %v290
    %v292 = vrot.slane %v18, %v291
    %293 = vmatprep.subr.mxu0 0.0
    %294 = vmatpush1.msra.mxu0 %v273
    %295 = vmatprep.subr.mxu0 0.0
    %296 = vmatpush1.msra.mxu0 %v274
    %297 = vmatprep.subr.mxu0 0.0
    %298 = vmatpush1.msra.mxu0 %v275
    %299 = vmatprep.subr.mxu0 0.0
    %300 = vmatpush1.msra.mxu0 %v276
    %301 = vmatprep.subr.mxu0 0.0
    %302 = vmatpush1.msra.mxu0 %v277
    %303 = vmatprep.subr.mxu0 0.0
    %304 = vmatpush1.msra.mxu0 %v278
    %305 = vmatprep.subr.mxu0 0.0
    %306 = vmatpush1.msra.mxu0 %v279
    %307 = vmatprep.subr.mxu0 0.0
    %308 = vmatpush1.msra.mxu0 %v280
    %309 = vmatprep.subr.mxu0 0.0
    %310 = vmatpush1.msra.mxu0 %v281
    %311 = vmatprep.subr.mxu0 0.0
    %312 = vmatpush1.msra.mxu0 %v282
    %313 = vmatprep.subr.mxu0 0.0
    %314 = vmatpush1.msra.mxu0 %v283
    %315 = vmatprep.subr.mxu0 0.0
    %316 = vmatpush1.msra.mxu0 %v284
    %317 = vmatprep.subr.mxu0 0.0
    %318 = vmatpush1.msra.mxu0 %v285
    %319 = vmatprep.subr.mxu0 0.0
    %320 = vmatpush1.msra.mxu0 %v286
    %321 = vmatprep.subr.mxu0 0.0
    %322 = vmatpush1.msra.mxu0 %v287
    %323 = vmatprep.subr.mxu0 0.0
    %324 = vmatpush1.msra.mxu0 %v288
    %325 = vmatprep.subr.mxu0 0.0
    %326 = vmatpush1.msra.mxu0 0.0
    %327 = vmatprep.subr.mxu0 0.0
    %328 = vmatpush1.msra.mxu0 0.0
    %329 = vmatprep.subr.mxu0 0.0
    %330 = vmatpush1.msra.mxu0 0.0
    %331 = vmatprep.subr.mxu0 0.0
    %332 = vmatpush1.msra.mxu0 0.0
    %333 = vmatprep.subr.mxu0 0.0
    %334 = vmatpush1.msra.mxu0 0.0
    %335 = vmatprep.subr.mxu0 0.0
    %336 = vmatpush1.msra.mxu0 0.0
    %337 = vmatprep.subr.mxu0 0.0
    %338 = vmatpush1.msra.mxu0 0.0
    %339 = vmatprep.subr.mxu0 0.0
    %340 = vmatpush1.msra.mxu0 0.0
    %341 = vmatprep.subr.mxu0 0.0
    %342 = vmatpush1.msra.mxu0 0.0
    %343 = vmatprep.subr.mxu0 0.0
    %344 = vmatpush1.msra.mxu0 0.0
    %345 = vmatprep.subr.mxu0 0.0
    %346 = vmatpush1.msra.mxu0 0.0
    %347 = vmatprep.subr.mxu0 0.0
    %348 = vmatpush1.msra.mxu0 0.0
    %349 = vmatprep.subr.mxu0 0.0
    %350 = vmatpush1.msra.mxu0 0.0
    %351 = vmatprep.subr.mxu0 0.0
    %352 = vmatpush1.msra.mxu0 0.0
    %353 = vmatprep.subr.mxu0 0.0
    %354 = vmatpush1.msra.mxu0 0.0
    %355 = vmatprep.subr.mxu0 0.0
    %356 = vmatpush1.msra.mxu0 0.0
    %357 = vmatprep.mubr.f32.mxu0 0.0
    %358 = vmatmul.mubr.f32.gmra.mrb[0].mxu0 %v270
    %v359 = vpop.f32.mrb[0].mxu0
    %v360 = vadd.f32 %v292, %v359
    %v361 = vpop.f32.mrb[0].mxu0
    %362 = vmatprep.mubr.f32.mxu0 0.0
    %363 = vmatmul.mubr.f32.gmra.mrb[0].mxu0 %v271
    %v364 = vpop.f32.mrb[0].mxu0
    %v365 = vadd.f32 %v292, %v364
    %v366 = vpop.f32.mrb[0].mxu0
    %367 = vdwg.mxu0
    %368 = vst.msk [vmem:[#allocation2 + $0x2] sm:$0xff] %vm19, %v360
    %369 = vst.msk [vmem:[#allocation2 + $0x12] sm:$0xff] %vm19, %v365
    %v370 = vld [vmem:[#allocation2] sm:$0xff]
    %v371 = vld [vmem:[#allocation2 + $0x10] sm:$0xff]
    %v372 = vld [vmem:[#allocation2 + $0x2] sm:$0xff]
    %v373 = vld [vmem:[#allocation2 + $0x12] sm:$0xff]
    %v374 = vld [vmem:[#allocation2 + $0x4] sm:$0xff]
    %v375 = vld [vmem:[#allocation2 + $0x14] sm:$0xff]
    %378 = vrot.lane.b32.xlu0 %v372, 32
    %v379 = vpop.permute.xlu0 %378
    %380 = vrot.lane.b32.xlu0 %v373, 32
    %v381 = vpop.permute.xlu0 %380
    %386 = vrot.lane.b32.xlu0 %v374, 64
    %v387 = vpop.permute.xlu0 %386
    %388 = vrot.lane.b32.xlu0 %v375, 64
    %v389 = vpop.permute.xlu0 %388
    %v392 = vsel %vm19, %v370, %v379
    %v393 = vsel %vm19, %v371, %v381
    %v394 = vsel %vm141, %v392, %v387
    %v395 = vsel %vm141, %v393, %v389
    %v396 = vsel %vm144, %v394, 0.0
    %v397 = vsel %vm144, %v395, 0.0
    %s398 = scalar_lea.vmem %s2, 256
    %v399 = vld [vmem:[%s398] sm:$0xff]
    %v400 = vld [vmem:[%s398 + $0x8] sm:$0xff]
    %v401 = vld [vmem:[%s398 + $0x10] sm:$0xff]
    %v402 = vld [vmem:[%s398 + $0x18] sm:$0xff]
    %v403 = vld [vmem:[%s398 + $0x20] sm:$0xff]
    %v404 = vld [vmem:[%s398 + $0x28] sm:$0xff]
    %v405 = vld [vmem:[%s398 + $0x30] sm:$0xff]
    %v406 = vld [vmem:[%s398 + $0x38] sm:$0xff]
    %v407 = vld [vmem:[%s398 + $0x40] sm:$0xff]
    %v408 = vld [vmem:[%s398 + $0x48] sm:$0xff]
    %v409 = vld [vmem:[%s398 + $0x50] sm:$0xff]
    %v410 = vld [vmem:[%s398 + $0x58] sm:$0xff]
    %v411 = vld [vmem:[%s398 + $0x60] sm:$0xff]
    %v412 = vld [vmem:[%s398 + $0x68] sm:$0xff]
    %v413 = vld [vmem:[%s398 + $0x70] sm:$0xff]
    %v414 = vld [vmem:[%s398 + $0x78] sm:$0xff]
    %v415 = vlaneseq
    %v416 = vshrl.u32 %v415, 7
    %v417 = vsub.s32 3, %v416
    %v418 = vrot.slane %v18, %v417
    %419 = vmatprep.subr.mxu0 0.0
    %420 = vmatpush1.msra.mxu0 %v399
    %421 = vmatprep.subr.mxu0 0.0
    %422 = vmatpush1.msra.mxu0 %v400
    %423 = vmatprep.subr.mxu0 0.0
    %424 = vmatpush1.msra.mxu0 %v401
    %425 = vmatprep.subr.mxu0 0.0
    %426 = vmatpush1.msra.mxu0 %v402
    %427 = vmatprep.subr.mxu0 0.0
    %428 = vmatpush1.msra.mxu0 %v403
    %429 = vmatprep.subr.mxu0 0.0
    %430 = vmatpush1.msra.mxu0 %v404
    %431 = vmatprep.subr.mxu0 0.0
    %432 = vmatpush1.msra.mxu0 %v405
    %433 = vmatprep.subr.mxu0 0.0
    %434 = vmatpush1.msra.mxu0 %v406
    %435 = vmatprep.subr.mxu0 0.0
    %436 = vmatpush1.msra.mxu0 %v407
    %437 = vmatprep.subr.mxu0 0.0
    %438 = vmatpush1.msra.mxu0 %v408
    %439 = vmatprep.subr.mxu0 0.0
    %440 = vmatpush1.msra.mxu0 %v409
    %441 = vmatprep.subr.mxu0 0.0
    %442 = vmatpush1.msra.mxu0 %v410
    %443 = vmatprep.subr.mxu0 0.0
    %444 = vmatpush1.msra.mxu0 %v411
    %445 = vmatprep.subr.mxu0 0.0
    %446 = vmatpush1.msra.mxu0 %v412
    %447 = vmatprep.subr.mxu0 0.0
    %448 = vmatpush1.msra.mxu0 %v413
    %449 = vmatprep.subr.mxu0 0.0
    %450 = vmatpush1.msra.mxu0 %v414
    %451 = vmatprep.subr.mxu0 0.0
    %452 = vmatpush1.msra.mxu0 0.0
    %453 = vmatprep.subr.mxu0 0.0
    %454 = vmatpush1.msra.mxu0 0.0
    %455 = vmatprep.subr.mxu0 0.0
    %456 = vmatpush1.msra.mxu0 0.0
    %457 = vmatprep.subr.mxu0 0.0
    %458 = vmatpush1.msra.mxu0 0.0
    %459 = vmatprep.subr.mxu0 0.0
    %460 = vmatpush1.msra.mxu0 0.0
    %461 = vmatprep.subr.mxu0 0.0
    %462 = vmatpush1.msra.mxu0 0.0
    %463 = vmatprep.subr.mxu0 0.0
    %464 = vmatpush1.msra.mxu0 0.0
    %465 = vmatprep.subr.mxu0 0.0
    %466 = vmatpush1.msra.mxu0 0.0
    %467 = vmatprep.subr.mxu0 0.0
    %468 = vmatpush1.msra.mxu0 0.0
    %469 = vmatprep.subr.mxu0 0.0
    %470 = vmatpush1.msra.mxu0 0.0
    %471 = vmatprep.subr.mxu0 0.0
    %472 = vmatpush1.msra.mxu0 0.0
    %473 = vmatprep.subr.mxu0 0.0
    %474 = vmatpush1.msra.mxu0 0.0
    %475 = vmatprep.subr.mxu0 0.0
    %476 = vmatpush1.msra.mxu0 0.0
    %477 = vmatprep.subr.mxu0 0.0
    %478 = vmatpush1.msra.mxu0 0.0
    %479 = vmatprep.subr.mxu0 0.0
    %480 = vmatpush1.msra.mxu0 0.0
    %481 = vmatprep.subr.mxu0 0.0
    %482 = vmatpush1.msra.mxu0 0.0
    %483 = vmatprep.mubr.f32.mxu0 0.0
    %484 = vmatmul.mubr.f32.gmra.mrb[0].mxu0 %v396
    %v485 = vpop.f32.mrb[0].mxu0
    %v486 = vadd.f32 %v418, %v485
    %v487 = vpop.f32.mrb[0].mxu0
    %488 = vmatprep.mubr.f32.mxu0 0.0
    %489 = vmatmul.mubr.f32.gmra.mrb[0].mxu0 %v397
    %v490 = vpop.f32.mrb[0].mxu0
    %v491 = vadd.f32 %v418, %v490
    %v492 = vpop.f32.mrb[0].mxu0
    %493 = vdwg.mxu0
    %v494 = vmax.f32 %v486, 0.0
    %v495 = vmax.f32 %v491, 0.0
    %v496 = vsel %vm19, %v494, 0.0
    %497 = vadd.xlane.f32.xlu0 %v496
    %v498 = vpop.xlane.xlu0 %497
    %v499 = vsel %vm19, %v495, 0.0
    %500 = vadd.xlane.f32.xlu0 %v499
    %v501 = vpop.xlane.xlu0 %500
    %v502 = vrcp.pop 32.0
    %v503 = vmul.f32 %v498, %v502
    %v504 = vmul.f32 %v501, %v502
    %v505 = vsub.f32 %v494, %v503
    %v506 = vsub.f32 %v495, %v504
    %v507 = vmul.f32 %v505, %v505
    %v508 = vmul.f32 %v506, %v506
    %v509 = vsel %vm19, %v507, 0.0
    %510 = vadd.xlane.f32.xlu0 %v509
    %v511 = vpop.xlane.xlu0 %510
    %v512 = vsel %vm19, %v508, 0.0
    %513 = vadd.xlane.f32.xlu0 %v512
    %v514 = vpop.xlane.xlu0 %513
    %v515 = vmul.f32 %v511, %v502
    %v516 = vmul.f32 %v514, %v502
    %v517 = vadd.f32 %v515, 1e-05
    %v518 = vadd.f32 %v516, 1e-05
    %v519 = vrsqrt.pop %v517
    %v520 = vrsqrt.pop %v518
    %v521 = vmul.f32 %v505, %v519
    %v522 = vmul.f32 %v506, %v520
    %v523 = vlaneseq
    %v524 = vshrl.u32 %v523, 7
    %v525 = vsub.s32 4, %v524
    %v526 = vrot.slane %v18, %v525
    %v527 = vmul.f32 %v521, %v526
    %v528 = vmul.f32 %v522, %v526
    %v529 = vlaneseq
    %v530 = vshrl.u32 %v529, 7
    %v531 = vsub.s32 5, %v530
    %v532 = vrot.slane %v18, %v531
    %v533 = vadd.f32 %v527, %v532
    %v534 = vadd.f32 %v528, %v532
    %v537 = vcombine.high %v533, %v533
    %v538 = vcombine.high %v534, %v534
    %v539 = vlaneseq
    %v540 = vshrl.u32 %v539, 7
    %v541 = vsub.s32 0, %v540
    %v542 = vrot.slane %v533, %v541
    %v543 = vlaneseq
    %v544 = vshrl.u32 %v543, 7
    %v545 = vsub.s32 0, %v544
    %v546 = vrot.slane %v537, %v545
    %v547 = vlaneseq
    %v548 = vshrl.u32 %v547, 7
    %v549 = vsub.s32 0, %v548
    %v550 = vrot.slane %v534, %v549
    %v551 = vlaneseq
    %v552 = vshrl.u32 %v551, 7
    %v553 = vsub.s32 0, %v552
    %v554 = vrot.slane %v538, %v553
    %vm555 = vcmask 1041409
    %v556 = vsel %vm555, %v546, %v542
    %vm557 = vcmask 1042434
    %v558 = vsel %vm557, %v550, %v556
    %vm559 = vcmask 1043459
    %v560 = vsel %vm559, %v554, %v558
    %v562 = vlaneseq
    %v563 = vshrl.u32 %v562, 7
    %v564 = vsub.s32 1, %v563
    %v565 = vrot.slane %v533, %v564
    %v566 = vlaneseq
    %v567 = vshrl.u32 %v566, 7
    %v568 = vsub.s32 1, %v567
    %v569 = vrot.slane %v537, %v568
    %v570 = vlaneseq
    %v571 = vshrl.u32 %v570, 7
    %v572 = vsub.s32 1, %v571
    %v573 = vrot.slane %v534, %v572
    %v574 = vlaneseq
    %v575 = vshrl.u32 %v574, 7
    %v576 = vsub.s32 1, %v575
    %v577 = vrot.slane %v538, %v576
    %v578 = vsel %vm555, %v569, %v565
    %v579 = vsel %vm557, %v573, %v578
    %v580 = vsel %vm559, %v577, %v579
    %581 = vrot.lane.b32.xlu0 %v580, 32
    %v582 = vpop.permute.xlu0 %581
    %v584 = vlaneseq
    %v585 = vshrl.u32 %v584, 7
    %v586 = vsub.s32 2, %v585
    %v587 = vrot.slane %v533, %v586
    %v588 = vlaneseq
    %v589 = vshrl.u32 %v588, 7
    %v590 = vsub.s32 2, %v589
    %v591 = vrot.slane %v537, %v590
    %v592 = vlaneseq
    %v593 = vshrl.u32 %v592, 7
    %v594 = vsub.s32 2, %v593
    %v595 = vrot.slane %v534, %v594
    %v596 = vlaneseq
    %v597 = vshrl.u32 %v596, 7
    %v598 = vsub.s32 2, %v597
    %v599 = vrot.slane %v538, %v598
    %v600 = vsel %vm555, %v591, %v587
    %v601 = vsel %vm557, %v595, %v600
    %v602 = vsel %vm559, %v599, %v601
    %603 = vrot.lane.b32.xlu0 %v602, 64
    %v604 = vpop.permute.xlu0 %603
    %v606 = vlaneseq
    %v607 = vshrl.u32 %v606, 7
    %v608 = vsub.s32 3, %v607
    %v609 = vrot.slane %v533, %v608
    %v610 = vlaneseq
    %v611 = vshrl.u32 %v610, 7
    %v612 = vsub.s32 3, %v611
    %v613 = vrot.slane %v537, %v612
    %v614 = vlaneseq
    %v615 = vshrl.u32 %v614, 7
    %v616 = vsub.s32 3, %v615
    %v617 = vrot.slane %v534, %v616
    %v618 = vlaneseq
    %v619 = vshrl.u32 %v618, 7
    %v620 = vsub.s32 3, %v619
    %v621 = vrot.slane %v538, %v620
    %v622 = vsel %vm555, %v613, %v609
    %v623 = vsel %vm557, %v617, %v622
    %v624 = vsel %vm559, %v621, %v623
    %625 = vrot.lane.b32.xlu0 %v624, 96
    %v626 = vpop.permute.xlu0 %625
    %v628 = vsel %vm19, %v560, %v582
    %v629 = vsel %vm141, %v628, %v604
    %v630 = vsel %vm144, %v629, %v626
    %631 = vst [vmem:[#allocation3] sm:$0xf] %v630
    // Predicated region
    $region18: #{tpu_custom_call.1} parent=1 // pred_check
      _
    $region19: #{tpu_custom_call.1} parent=1 // pred_check_branch
      %633 = sbr.rel (0) target = $region21
    $region20: #{tpu_custom_call.1} parent=1 // pred_region
      %s635 = ssub.s32 64, 64
      %636 = vsyncadd [#allocation4], %s635
      %s638 = sshll.u32 [#allocation3], 4
      %s639 = int_to_ptr.vmem [resolvable:$true] %s638
      %641 = dma.vmem_to_hbm [thread:$0]  %s639, 64, %s4, [#allocation4]
    $region21: #{tpu_custom_call.1} parent=1 // pred_fallthru
      _
    // Predicated region
    $region22: #{tpu_custom_call.1} parent=1 // pred_check
      _
    $region23: #{tpu_custom_call.1} parent=1 // pred_check_branch
      %643 = sbr.rel (0) target = $region25
    $region24: #{tpu_custom_call.1} parent=1 // pred_region
      %644 = dma.done [#allocation4], 64
    $region25: #{tpu_custom_call.1} parent=1 // pred_fallthru
      _
    %645 = vsyncpa [#allocation4], 1

</llo_original>
